<compile_context>
chip_gen: v7x
topology: tpu7x:2x2x1
jax: 0.10.0
libtpu: 0.0.40
codegen_flags: <defaults>
</compile_context>

<pallas_src>
import functools

import numpy as np
import jax
import jax.numpy as jnp
from jax.experimental import pallas as pl
from jax.experimental.pallas import tpu as pltpu


# ---------------------------------------------------------------------------
# Host-side fog map generation (diamond-square), deterministic via RandomState.
# Mirrors Fog.diamondsquare exactly, just with a seeded RNG.
# TODO(synk): the diamond-square generator is inherently sequential host-side
# numpy RNG code in the reference module; it stays on the host.
# ---------------------------------------------------------------------------
def diamondsquare(mapsize, wibbledecay, rng):
    assert mapsize & (mapsize - 1) == 0
    maparray = np.empty((mapsize, mapsize), dtype=np.float64)
    maparray[0, 0] = 0
    stepsize = mapsize
    wibble = 100.0

    def wibbledmean(array):
        return array / 4 + rng.uniform(-wibble, wibble, array.shape)

    def fillsquares():
        cornerref = maparray[0:mapsize:stepsize, 0:mapsize:stepsize]
        squareaccum = cornerref + np.roll(cornerref, shift=-1, axis=0)
        squareaccum += np.roll(squareaccum, shift=-1, axis=1)
        maparray[stepsize // 2:mapsize:stepsize,
                 stepsize // 2:mapsize:stepsize] = wibbledmean(squareaccum)

    def filldiamonds():
        msz = maparray.shape[0]
        drgrid = maparray[stepsize // 2:msz:stepsize, stepsize // 2:msz:stepsize]
        ulgrid = maparray[0:msz:stepsize, 0:msz:stepsize]
        ldrsum = drgrid + np.roll(drgrid, 1, axis=0)
        lulsum = ulgrid + np.roll(ulgrid, -1, axis=1)
        ltsum = ldrsum + lulsum
        maparray[0:msz:stepsize, stepsize // 2:msz:stepsize] = wibbledmean(ltsum)
        tdrsum = drgrid + np.roll(drgrid, 1, axis=1)
        tulsum = ulgrid + np.roll(ulgrid, -1, axis=0)
        ttsum = tdrsum + tulsum
        maparray[stepsize // 2:msz:stepsize, 0:msz:stepsize] = wibbledmean(ttsum)

    while stepsize >= 2:
        fillsquares()
        filldiamonds()
        stepsize //= 2
        wibble /= wibbledecay

    maparray -= maparray.min()
    return maparray / maparray.max()


# ---------------------------------------------------------------------------
# Pallas kernel: per-image max reduce + broadcasted fog add + scalar rescale.
# Block layout: x/out (Bt, C*HW), fog (Bt, HW)  -- one row per image.
# ---------------------------------------------------------------------------
def fog_kernel(x_ref, fog_ref, o_ref, *, coef0, channels, hw):
    x = x_ref[...].astype(jnp.float32)                 # (Bt, C*HW)
    fog = fog_ref[...].astype(jnp.float32)             # (Bt, HW)
    # Per-image max over all channels/pixels, BEFORE adding fog (matches torch).
    max_val = jnp.max(x, axis=1, keepdims=True)        # (Bt, 1)
    # Fold the rescale into a single per-image scalar (exact divide on (Bt,1)):
    #   out = x*scale + (coef0*scale)*fog,  scale = max/(max+coef0)
    scale = max_val / (max_val + coef0)                # (Bt, 1)
    fog_add = (coef0 * scale) * fog                    # (Bt, HW)
    # Write one channel chunk at a time: the fog term is never materialized at
    # (Bt, C*HW), and every slice boundary is a multiple of HW (lane-tile
    # aligned for the usual power-of-two / 224-style spatial sizes).
    for c in range(channels):
        lo = c * hw
        o_ref[:, lo:lo + hw] = (x[:, lo:lo + hw] * scale + fog_add).astype(o_ref.dtype)


# ---------------------------------------------------------------------------
# Tiling / VMEM-budget helpers.
# ---------------------------------------------------------------------------
def _round_up(n, m):
    return ((n + m - 1) // m) * m


def _tpu_vmem_and_cores():
    """Generation-aware VMEM capacity + TensorCores per device (best effort)."""
    vmem_cap = 64 << 20          # conservative default: v7x has the smallest VMEM
    cores = 1
    try:
        info = pltpu.get_tpu_info()
        vmem_cap = int(getattr(info, "vmem_capacity_bytes", vmem_cap))
        for name in ("num_cores", "num_tensorcores", "tensorcores_per_chip",
                     "cores_per_chip", "core_count"):
            val = getattr(info, name, None)
            if val:
                cores = int(val)
                break
    except Exception:
        pass
    try:
        dev = jax.local_devices()[0]
        cores = max(cores, int(getattr(dev, "num_cores", cores) or cores))
    except Exception:
        pass
    return vmem_cap, cores


def fog_attack(images, fog_maps, coef0):
    """images: (B, C, H, W) f32; fog_maps: (B, H, W) f32 (already transposed).

    TODO(synk): if the caller can hand over (B, C*H*W) / (B, H*W) arrays
    directly (or W is already a multiple of 128), the reshapes below are free
    bitcasts; otherwise XLA inserts one relayout copy per reshape (unavoidable
    for lane-narrow 4-D inputs like 16x16 / 224x224).
    """
    B, C, H, W = images.shape
    HW = H * W
    CHW = C * HW
    itemsize = jnp.dtype(images.dtype).itemsize

    # Lane-dense streaming layout: one row per image.
    x = images.reshape(B, CHW)
    fog = fog_maps.reshape(B, HW)

    # --- generation-aware VMEM budget (padded (8,128) shapes) ---------------
    vmem_cap, cores = _tpu_vmem_and_cores()
    vmem_usable = (vmem_cap * 3) // 4           # stay well below physical VMEM
    headroom = 4 << 20                          # temporaries + compiler scratch
    tile_budget = max(vmem_usable - headroom, 4 << 20)

    chw_p = _round_up(CHW, 128)
    hw_p = _round_up(HW, 128)
    row_bytes = (2 * chw_p + hw_p) * itemsize   # x tile + out tile + fog tile, per image

    # --- tile (block-batch) sizing ------------------------------------------
    target_x_bytes = 4 << 20                    # ~4 MiB of input per grid step
    bt = max(1, min(B,
                    target_x_bytes // max(chw_p * itemsize, 1),
                    tile_budget // max(2 * row_bytes, 1)))      # 2x: double-buffered

    # Multi-TensorCore chips only (v7x): keep >= `cores` grid steps, but only
    # if the per-core tile is still >= half the size target.  Single-TC chips
    # (v5e/v6e) never split -- the grid is a serial loop there.
    if cores > 1 and B >= cores:
        bt_par = pl.cdiv(B, cores)
        if bt_par * chw_p * itemsize * 2 >= target_x_bytes:
            bt = min(bt, bt_par)

    # (8,128) rule: the sublane block dim must be a multiple of 8 unless it
    # spans the full batch.  (Can bump tiny bt up to 8 for giant images; the
    # VMEM limit below is clamped to the physical budget regardless.)
    if bt < B and bt % 8 != 0:
        bt = max(8, (bt // 8) * 8)

    grid = pl.cdiv(B, bt)                       # ragged last block: OOB rows are
                                                # padded on read, dropped on write.

    bt_p = _round_up(bt, 8)
    needed = 2 * bt_p * row_bytes + headroom
    vmem_limit = int(min(vmem_usable, max(needed, 16 << 20)))

    cost = pl.CostEstimate(
        flops=3 * B * CHW,
        transcendentals=0,
        bytes_accessed=(2 * B * CHW + B * HW) * itemsize,
    )

    kernel = functools.partial(fog_kernel, coef0=float(coef0), channels=C, hw=HW)
    out = pl.pallas_call(
        kernel,
        out_shape=jax.ShapeDtypeStruct((B, CHW), images.dtype),
        grid_spec=pl.GridSpec(
            grid=(grid,),
            in_specs=[
                pl.BlockSpec((bt, CHW), lambda b: (b, 0)),
                pl.BlockSpec((bt, HW), lambda b: (b, 0)),
            ],
            out_specs=pl.BlockSpec((bt, CHW), lambda b: (b, 0)),
        ),
        compiler_params=pltpu.CompilerParams(
            dimension_semantics=("parallel",),
            vmem_limit_bytes=vmem_limit,
        ),
        cost_estimate=cost,
        # input_output_aliases={0: 0} would save one HBM allocation, but the
        # reshaped x may alias the caller's `images`, so keep it unaliased.
    )(x, fog)
    return out.reshape(B, C, H, W)


# ---------------------------------------------------------------------------
# Pure-numpy reference for verification (mirrors the torch forward).
# ---------------------------------------------------------------------------
def fog_ref(images_np, fog_maps_np, coef0):
    out = np.empty_like(images_np)
    for idx in range(images_np.shape[0]):
        image = images_np[idx].astype(np.float64)
        max_val = image.max()
        image = image + coef0 * fog_maps_np[idx][None, :, :]
        out[idx] = (image * max_val / (max_val + coef0)).astype(images_np.dtype)
    return out


if __name__ == "__main__":
    coef = [2.5, 1.7]
    B, C, H, W = 2, 4, 16, 16   # spatial = mapsize (power of 2), small test size

    # Deterministic inputs.
    key = jax.random.PRNGKey(0)
    images = jax.random.uniform(key, (B, C, H, W), dtype=jnp.float32)

    # One fog map per image (the reference calls diamondsquare per image),
    # deterministic via seeded RandomState.  The reference adds
    # map[..., None].transpose(2, 1, 0), i.e. the transposed map — transpose
    # here on the host so the kernel does a plain broadcast over channels.
    rng = np.random.RandomState(0)
    fog_maps_np = np.stack(
        [diamondsquare(H, coef[1], rng).T for _ in range(B)]
    ).astype(np.float32)                               # (B, H, W)
    fog_maps = jnp.asarray(fog_maps_np)

    fog_fn = jax.jit(functools.partial(fog_attack, coef0=float(coef[0])))
    out = jax.block_until_ready(fog_fn(images, fog_maps))

    # Verify against the plain reference implementation.
    expected = fog_ref(np.asarray(images), fog_maps_np, coef[0])
    np.testing.assert_allclose(np.asarray(out), expected, rtol=1e-5, atol=1e-5)

    print("KERNEL_OK")
</pallas_src>

<mosaic_0001>
module attributes {stable_mosaic.version = 11 : i64} {
  func.func @fog_kernel(%arg0: i32, %arg1: memref<2x1024xf32, #tpu.memory_space<vmem>>, %arg2: memref<2x256xf32, #tpu.memory_space<vmem>>, %arg3: memref<2x1024xf32, #tpu.memory_space<vmem>>) attributes {dimension_semantics = [#tpu.dimension_semantics<parallel>], iteration_bounds = array<i64: 1>, scalar_prefetch = 0 : i64, scratch_operands = 0 : i64, tpu.core_type = #tpu.core_type<tc>, window_params = [{transform_indices = @transform_0, window_bounds = array<i64: 2, 1024>}, {transform_indices = @transform_1, window_bounds = array<i64: 2, 256>}, {transform_indices = @transform_2, window_bounds = array<i64: 2, 1024>}]} {
    %c0 = arith.constant 0 : index
    %c0_0 = arith.constant 0 : index
    %0 = vector.load %arg1[%c0, %c0_0] : memref<2x1024xf32, #tpu.memory_space<vmem>>, vector<2x1024xf32>
    %c0_1 = arith.constant 0 : index
    %c0_2 = arith.constant 0 : index
    %1 = vector.load %arg2[%c0_1, %c0_2] : memref<2x256xf32, #tpu.memory_space<vmem>>, vector<2x256xf32>
    %cst = arith.constant dense<0xFF800000> : vector<2xf32>
    %2 = vector.multi_reduction <maximumf>, %0, %cst [1] : vector<2x1024xf32> to vector<2xf32>
    %3 = vector.shape_cast %2 : vector<2xf32> to vector<2x1xf32>
    %cst_3 = arith.constant 2.500000e+00 : f32
    %4 = vector.broadcast %cst_3 : f32 to vector<2x1xf32>
    %5 = arith.addf %3, %4 : vector<2x1xf32>
    %6 = arith.divf %3, %5 : vector<2x1xf32>
    %cst_4 = arith.constant 2.500000e+00 : f32
    %7 = vector.broadcast %cst_4 : f32 to vector<2x1xf32>
    %8 = arith.mulf %7, %6 : vector<2x1xf32>
    %9 = vector.broadcast %8 : vector<2x1xf32> to vector<2x256xf32>
    %10 = arith.mulf %9, %1 : vector<2x256xf32>
    %11 = vector.extract_strided_slice %0 {offsets = [0, 0], sizes = [2, 256], strides = [1, 1]} : vector<2x1024xf32> to vector<2x256xf32>
    %12 = vector.broadcast %6 : vector<2x1xf32> to vector<2x256xf32>
    %13 = arith.mulf %11, %12 : vector<2x256xf32>
    %14 = arith.addf %13, %10 : vector<2x256xf32>
    %c0_5 = arith.constant 0 : index
    %c0_6 = arith.constant 0 : index
    %15 = vector.load %arg3[%c0_5, %c0_6] : memref<2x1024xf32, #tpu.memory_space<vmem>>, vector<2x256xf32>
    tpu.vector_store %arg3[%c0_5, %c0_6], %14 {strides = array<i32>} : memref<2x1024xf32, #tpu.memory_space<vmem>>, vector<2x256xf32>,
    %16 = vector.extract_strided_slice %0 {offsets = [0, 256], sizes = [2, 256], strides = [1, 1]} : vector<2x1024xf32> to vector<2x256xf32>
    %17 = vector.broadcast %6 : vector<2x1xf32> to vector<2x256xf32>
    %18 = arith.mulf %16, %17 : vector<2x256xf32>
    %19 = arith.addf %18, %10 : vector<2x256xf32>
    %c0_7 = arith.constant 0 : index
    %c256 = arith.constant 256 : index
    %20 = vector.load %arg3[%c0_7, %c256] : memref<2x1024xf32, #tpu.memory_space<vmem>>, vector<2x256xf32>
    tpu.vector_store %arg3[%c0_7, %c256], %19 {strides = array<i32>} : memref<2x1024xf32, #tpu.memory_space<vmem>>, vector<2x256xf32>,
    %21 = vector.extract_strided_slice %0 {offsets = [0, 512], sizes = [2, 256], strides = [1, 1]} : vector<2x1024xf32> to vector<2x256xf32>
    %22 = vector.broadcast %6 : vector<2x1xf32> to vector<2x256xf32>
    %23 = arith.mulf %21, %22 : vector<2x256xf32>
    %24 = arith.addf %23, %10 : vector<2x256xf32>
    %c0_8 = arith.constant 0 : index
    %c512 = arith.constant 512 : index
    %25 = vector.load %arg3[%c0_8, %c512] : memref<2x1024xf32, #tpu.memory_space<vmem>>, vector<2x256xf32>
    tpu.vector_store %arg3[%c0_8, %c512], %24 {strides = array<i32>} : memref<2x1024xf32, #tpu.memory_space<vmem>>, vector<2x256xf32>,
    %26 = vector.extract_strided_slice %0 {offsets = [0, 768], sizes = [2, 256], strides = [1, 1]} : vector<2x1024xf32> to vector<2x256xf32>
    %27 = vector.broadcast %6 : vector<2x1xf32> to vector<2x256xf32>
    %28 = arith.mulf %26, %27 : vector<2x256xf32>
    %29 = arith.addf %28, %10 : vector<2x256xf32>
    %c0_9 = arith.constant 0 : index
    %c768 = arith.constant 768 : index
    %30 = vector.load %arg3[%c0_9, %c768] : memref<2x1024xf32, #tpu.memory_space<vmem>>, vector<2x256xf32>
    tpu.vector_store %arg3[%c0_9, %c768], %29 {strides = array<i32>} : memref<2x1024xf32, #tpu.memory_space<vmem>>, vector<2x256xf32>,
    return
  }
  func.func @transform_0(%arg0: i32) -> (i32, i32) {
    %c0_i32 = arith.constant 0 : i32
    %c0_i32_0 = arith.constant 0 : i32
    return %arg0, %c0_i32 : i32, i32
  }
  func.func @transform_1(%arg0: i32) -> (i32, i32) {
    %c0_i32 = arith.constant 0 : i32
    %c0_i32_0 = arith.constant 0 : i32
    return %arg0, %c0_i32 : i32, i32
  }
  func.func @transform_2(%arg0: i32) -> (i32, i32) {
    %c0_i32 = arith.constant 0 : i32
    %c0_i32_0 = arith.constant 0 : i32
    return %arg0, %c0_i32 : i32, i32
  }
}

</mosaic_0001>

<llo_original>
// kernel: fog_attack.1
$region0: #{fog_attack.1}
  #allocation0 [shape = 'u32[]', space=smem, size = 0x4, offset = 0x4, fixed_abs, tag = 'smem constant byte address 0x4 - core index']
  #allocation1 [shape = 'u32[144,128]{1,0:T(1,128)}', space=vmem, size = 0x12000, scoped, tag = 'internal scratch']
  %s0 = inlined_call_operand.vmem [shape: f32[2,1024], index: 0, kind: input, shape index: {}]
  %s1 = inlined_call_operand.vmem [shape: f32[2,256], index: 1, kind: input, shape index: {}]
  %s2 = inlined_call_operand.vmem [shape: f32[2,1024], index: 2, kind: output, shape index: {}]
  %s3 = sld [smem:[#allocation0]]
  $region18: #{fog_attack.1} parent=0
    _
  %s5 = ssub.s32 1, %s3
  %s6 = scalar_select 0, %s5, %s3
  // Predicated region
  $region2: #{fog_attack.1} parent=0 // pred_check
    _
  $region3: #{fog_attack.1} parent=0 // pred_check_branch
    %8 = sbr.rel (0) target = $region5
  $region4: #{fog_attack.1} parent=0 // pred_region
    _
  $region5: #{fog_attack.1} parent=0 // pred_fallthru
    _
  // Predicated region
  $region6: #{fog_attack.1} parent=0 // pred_check
    _
  $region7: #{fog_attack.1} parent=0 // pred_check_branch
    %10 = sbr.rel (0) target = $region9
  $region8: #{fog_attack.1} parent=0 // pred_region
    _
  $region9: #{fog_attack.1} parent=0 // pred_fallthru
    _
  %v11 = vld [vmem:[%s0] sm:$0xff]
  %v12 = vld [vmem:[%s0 + $0x8] sm:$0xff]
  %v13 = vld [vmem:[%s1] sm:$0xf]
  %v16 = vcombine.high %v11, %v11
  %v18 = vunpack.c.l.s4 1983009808
  %v19 = vunpack.c.0.s8 %v18
  %v20 = vlaneseq
  %v21 = vshrl.u32 %v20, 7
  %v22 = vsub.s32 %v19, %v21
  %v23 = vrot.slane %v11, %v22
  %v25 = vunpack.c.l.s4 1983009808
  %v26 = vunpack.c.0.s8 %v25
  %v27 = vlaneseq
  %v28 = vshrl.u32 %v27, 7
  %v29 = vsub.s32 %v26, %v28
  %v30 = vrot.slane %v16, %v29
  %v31 = vcombine.high %v23, %v23
  %v32 = vcombine.high %v30, %v30
  %v33 = vcombine.high %v12, %v12
  %v35 = vunpack.c.l.s4 1983009808
  %v36 = vunpack.c.0.s8 %v35
  %v37 = vlaneseq
  %v38 = vshrl.u32 %v37, 7
  %v39 = vsub.s32 %v36, %v38
  %v40 = vrot.slane %v12, %v39
  %v42 = vunpack.c.l.s4 1983009808
  %v43 = vunpack.c.0.s8 %v42
  %v44 = vlaneseq
  %v45 = vshrl.u32 %v44, 7
  %v46 = vsub.s32 %v43, %v45
  %v47 = vrot.slane %v33, %v46
  %v48 = vcombine.high %v40, %v40
  %v49 = vcombine.high %v47, %v47
  %vm58 = vcmask 1041408
  %v59 = vsel %vm58, %v23, -inf
  %v60 = vsel %vm58, %v31, -inf
  %v61 = vsel %vm58, %v30, -inf
  %v62 = vsel %vm58, %v32, -inf
  %v63 = vsel %vm58, %v40, -inf
  %v64 = vmax.f32 %v59, %v63
  %v65 = vsel %vm58, %v48, -inf
  %v66 = vmax.f32 %v60, %v65
  %v67 = vsel %vm58, %v47, -inf
  %v68 = vmax.f32 %v61, %v67
  %v69 = vsel %vm58, %v49, -inf
  %v70 = vmax.f32 %v62, %v69
  %v71 = vmax.f32 %v64, %v66
  %v72 = vmax.f32 %v68, %v70
  %v73 = vmax.f32 %v71, %v72
  %74 = vmax.xlane.f32.xlu0 %v73
  %v75 = vpop.xlane.xlu0 %74
  %v76 = vadd.f32 %v75, 2.5
  %v77 = vrcp.pop %v76
  %v78 = vmul.f32 %v75, %v77
  %v79 = vmul.f32 %v78, 2.5
  %v82 = vunpack.c.l.s4 1983009808
  %v83 = vunpack.c.0.s8 %v82
  %v84 = vlaneseq
  %v85 = vshrl.u32 %v84, 7
  %v86 = vsub.s32 %v83, %v85
  %v87 = vrot.slane %v13, %v86
  %v88 = vcombine.high %v87, %v87
  %v91 = vmul.f32 %v79, %v87
  %v92 = vmul.f32 %v79, %v88
  %v95 = vunpack.c.l.s4 269488144
  %v96 = vunpack.c.0.s8 %v95
  %v97 = vlaneseq
  %v98 = vshrl.u32 %v97, 7
  %v99 = vsub.s32 %v96, %v98
  %v100 = vrot.slane %v78, %v99
  %v102 = vmul.f32 %v11, %v100
  %v105 = vcombine.low %v91, %v92
  %v107 = vunpack.c.l.s4 1983009808
  %v108 = vunpack.c.0.s8 %v107
  %v109 = vlaneseq
  %v110 = vshrl.u32 %v109, 7
  %v111 = vsub.s32 %v108, %v110
  %v112 = vrot.slane %v105, %v111
  %v114 = vadd.f32 %v102, %v112
  %115 = vst [vmem:[%s2] sm:$0xf] %v114
  %v116 = vrot.slane %v11, 4
  %v118 = vmul.f32 %v116, %v100
  %v119 = vadd.f32 %v118, %v112
  %120 = vst [vmem:[%s2 + $0x4] sm:$0xf] %v119
  %v121 = vmul.f32 %v12, %v100
  %v122 = vadd.f32 %v121, %v112
  %123 = vst [vmem:[%s2 + $0x8] sm:$0xf] %v122
  %v124 = vrot.slane %v12, 4
  %v126 = vmul.f32 %v124, %v100
  %v127 = vadd.f32 %v126, %v112
  %128 = vst [vmem:[%s2 + $0xc] sm:$0xf] %v127
  // Predicated region
  $region10: #{fog_attack.1} parent=0 // pred_check
    _
  $region11: #{fog_attack.1} parent=0 // pred_check_branch
    %130 = sbr.rel (0) target = $region13
  $region12: #{fog_attack.1} parent=0 // pred_region
    _
  $region13: #{fog_attack.1} parent=0 // pred_fallthru
    _
  // Predicated region
  $region14: #{fog_attack.1} parent=0 // pred_check
    _
  $region15: #{fog_attack.1} parent=0 // pred_check_branch
    %132 = sbr.rel (0) target = $region17
  $region16: #{fog_attack.1} parent=0 // pred_region
    _
  $region17: #{fog_attack.1} parent=0 // pred_fallthru
    _

</llo_original>
